<compile_context>
chip_gen: v5e
topology: v5e:2x2
jax: 0.10.0
libtpu: 0.0.40
codegen_flags: <defaults>
</compile_context>

<pallas_src>
import functools

import jax
import jax.numpy as jnp
from jax.experimental import pallas as pl
from jax.experimental.pallas import tpu as pltpu

EPS = 1e-5
_MIB = 1024 * 1024


def _vmem_capacity_bytes():
    """Per-TensorCore VMEM capacity (v5e/v6e: 128 MiB, v7x: 64 MiB)."""
    try:
        cap = getattr(pltpu.get_tpu_info(), "vmem_capacity_bytes", None)
        if cap:
            return int(cap)
    except Exception:
        pass
    return 64 * _MIB  # conservative fallback: assume the smallest (v7x)


def _fold_params(w1, b1, gamma, beta, running_mean, running_var, w2, b2):
    """Pre-transpose the 1x1 conv weights and fold inference BatchNorm1d into
    the second conv:  bn(h) = h*a + c,  a = gamma/sqrt(var+eps),
    c = beta - mean*a,  so  bn(h) @ w2.T + b2 = h @ (w2*a).T + (w2 @ c + b2)."""
    f32 = jnp.float32
    BT = w1.shape[0]
    C = w2.shape[0]
    inv_std = jax.lax.rsqrt(running_var.astype(f32) + EPS)
    a = gamma.astype(f32) * inv_std                            # (BT,)
    c = beta.astype(f32) - running_mean.astype(f32) * a        # (BT,)

    w1t = w1.astype(f32).T                                     # (C, BT)
    b1_r = b1.astype(f32).reshape(1, BT)
    w2t = (w2.astype(f32) * a[None, :]).T                      # (BT, C)
    b2_r = (b2.astype(f32) + w2.astype(f32) @ c).reshape(1, C)
    return w1t, b1_r, w2t, b2_r


# ---------------------------------------------------------------------------
# Single-pass path: whole (bblk, C, T) slab per grid step.
# ---------------------------------------------------------------------------
def _se_kernel(x_ref, w1t_ref, b1_ref, w2t_ref, b2_ref, o_ref):
    x = x_ref[...]                                             # (bblk, C, T)

    # AdaptiveAvgPool1d(1): mean over T, accumulated in f32.
    xm = jnp.mean(x, axis=-1, dtype=jnp.float32)               # (bblk, C)

    # Conv1d(C -> BT, k=1) + ReLU (MXU, contract last dim).
    h = jnp.dot(xm, w1t_ref[...], preferred_element_type=jnp.float32)
    h = jnp.maximum(h + b1_ref[...], 0.0)                      # (bblk, BT)

    # Conv1d(BT -> C, k=1) with BatchNorm1d folded in, then sigmoid (EUP).
    s = jnp.dot(h, w2t_ref[...], preferred_element_type=jnp.float32)
    gate = jax.nn.sigmoid(s + b2_ref[...])                     # (bblk, C) f32

    # Channel-wise rescale in x's dtype.
    o_ref[...] = (x * gate.astype(x.dtype)[:, :, None]).astype(o_ref.dtype)


def _se_single_pass(x, w1t, b1_r, w2t, b2_r, *, bblk, vmem_limit):
    B, C, T = x.shape
    BT = w1t.shape[1]
    const = lambda shape: pl.BlockSpec(shape, lambda i: (0,) * len(shape))

    return pl.pallas_call(
        _se_kernel,
        out_shape=jax.ShapeDtypeStruct((B, C, T), x.dtype),
        grid_spec=pltpu.PrefetchScalarGridSpec(
            num_scalar_prefetch=0,
            grid=(B // bblk,),
            in_specs=[
                pl.BlockSpec((bblk, C, T), lambda i: (i, 0, 0)),  # x slab
                const((C, BT)),                                    # w1t
                const((1, BT)),                                    # b1
                const((BT, C)),                                    # w2t (BN folded)
                const((1, C)),                                     # b2  (BN folded)
            ],
            out_specs=pl.BlockSpec((bblk, C, T), lambda i: (i, 0, 0)),
        ),
        # x and the output have identical block index maps and each block is
        # fully read before it is written -> safe to reuse x's HBM buffer.
        input_output_aliases={0: 0},
        compiler_params=pltpu.CompilerParams(
            dimension_semantics=("parallel",),
            vmem_limit_bytes=int(vmem_limit)),
    )(x, w1t, b1_r, w2t, b2_r)


# ---------------------------------------------------------------------------
# Two-pass fallback: used when a single (C, T) slab (x4 double-buffered) does
# not fit VMEM (e.g. long-T ECAPA inputs on v7x's 64 MiB per TensorCore).
# Pass 1 streams T blocks, accumulates per-(B, C) f32 sums into a resident
# (B, C) output block and computes the sigmoid gate on the last T block.
# Pass 2 streams T blocks again and rescales.  ~1.5x HBM traffic, but it runs.
# ---------------------------------------------------------------------------
def _se_gate_kernel(x_ref, w1t_ref, b1_ref, w2t_ref, b2_ref, gate_ref, *,
                    inv_t, tblk, t_rem):
    b = pl.program_id(0)
    t = pl.program_id(1)
    n_t = pl.num_programs(1)
    row = pl.ds(b, 1)

    @pl.when(t == 0)
    def _():
        gate_ref[row, :] = jnp.zeros((1, gate_ref.shape[1]), jnp.float32)

    x = x_ref[...]                                             # (1, C, tblk)
    if t_rem:
        # Last T block reads past the array; mask the padded lanes out of the
        # sum (OOB values are unspecified).
        lane = jax.lax.broadcasted_iota(jnp.int32, x.shape, dimension=2)
        limit = jnp.where(t == n_t - 1, t_rem, tblk)
        x = jnp.where(lane < limit, x, jnp.zeros_like(x))
    gate_ref[row, :] += jnp.sum(x, axis=-1, dtype=jnp.float32)  # (1, C)

    @pl.when(t == n_t - 1)
    def _():
        xm = gate_ref[row, :] * inv_t                           # mean over T
        h = jnp.dot(xm, w1t_ref[...], preferred_element_type=jnp.float32)
        h = jnp.maximum(h + b1_ref[...], 0.0)
        s = jnp.dot(h, w2t_ref[...], preferred_element_type=jnp.float32)
        gate_ref[row, :] = jax.nn.sigmoid(s + b2_ref[...])


def _se_scale_kernel(x_ref, gate_ref, o_ref):
    b = pl.program_id(0)
    x = x_ref[...]                                             # (1, C, tblk)
    g = gate_ref[pl.ds(b, 1), :].astype(x.dtype)               # (1, C)
    o_ref[...] = (x * g[:, :, None]).astype(o_ref.dtype)


def _se_two_pass(x, w1t, b1_r, w2t, b2_r, *, tblk, vmem_limit):
    B, C, T = x.shape
    BT = w1t.shape[1]
    n_t = pl.cdiv(T, tblk)
    t_rem = T % tblk
    const = lambda shape: pl.BlockSpec(shape, lambda b, t: (0,) * len(shape))

    gate = pl.pallas_call(
        functools.partial(_se_gate_kernel, inv_t=1.0 / T, tblk=tblk, t_rem=t_rem),
        out_shape=jax.ShapeDtypeStruct((B, C), jnp.float32),
        grid_spec=pltpu.PrefetchScalarGridSpec(
            num_scalar_prefetch=0,
            grid=(B, n_t),
            in_specs=[
                pl.BlockSpec((1, C, tblk), lambda b, t: (b, 0, t)),
                const((C, BT)), const((1, BT)), const((BT, C)), const((1, C)),
            ],
            # Whole (B, C) gate stays resident in VMEM across the grid.
            out_specs=pl.BlockSpec((B, C), lambda b, t: (0, 0)),
        ),
        compiler_params=pltpu.CompilerParams(
            dimension_semantics=("arbitrary", "arbitrary"),
            vmem_limit_bytes=int(vmem_limit)),
    )(x, w1t, b1_r, w2t, b2_r)

    return pl.pallas_call(
        _se_scale_kernel,
        out_shape=jax.ShapeDtypeStruct((B, C, T), x.dtype),
        grid_spec=pltpu.PrefetchScalarGridSpec(
            num_scalar_prefetch=0,
            grid=(B, n_t),
            in_specs=[
                pl.BlockSpec((1, C, tblk), lambda b, t: (b, 0, t)),
                pl.BlockSpec((B, C), lambda b, t: (0, 0)),       # gate, resident
            ],
            out_specs=pl.BlockSpec((1, C, tblk), lambda b, t: (b, 0, t)),
        ),
        input_output_aliases={0: 0},
        compiler_params=pltpu.CompilerParams(
            dimension_semantics=("parallel", "parallel"),
            vmem_limit_bytes=int(vmem_limit)),
    )(x, gate)


# ---------------------------------------------------------------------------
# Public entry point.
# ---------------------------------------------------------------------------
@jax.jit
def se_module(x, w1, b1, gamma, beta, running_mean, running_var, w2, b2):
    B, C, T = x.shape
    BT = w1.shape[0]
    itemsize = x.dtype.itemsize

    w1t, b1_r, w2t, b2_r = _fold_params(
        w1, b1, gamma, beta, running_mean, running_var, w2, b2)

    # ---- generation-aware VMEM budgeting ------------------------------------
    cap = _vmem_capacity_bytes()                 # 128 MiB v5e/v6e, 64 MiB v7x
    vmem_limit = cap - 8 * _MIB                  # headroom for compiler scratch
    param_bytes = 4 * (2 * C * BT + BT + C)      # f32 params (double-buffered)
    usable = vmem_limit - 2 * param_bytes - 2 * _MIB
    slab = C * T * itemsize                      # one (1, C, T) slab

    if usable >= 4 * slab:
        # Single-pass path: input + output each double-buffered -> 4 slabs.
        per_slab = min(usable // 4, 24 * _MIB)   # ~13 MiB on v7x, 24 on v5e/v6e
        bblk = max(1, min(B, per_slab // slab))
        if B >= 2:
            bblk = min(bblk, max(1, B // 2))     # >= 2 grid steps -> 2 TCs (v7x)
        while B % bblk:                          # keep the grid exact (no ragged
            bblk -= 1                            # batch blocks, no host B-pad copy)
        return _se_single_pass(x, w1t, b1_r, w2t, b2_r,
                               bblk=bblk, vmem_limit=vmem_limit)

    # Fallback: T-tiled two-pass variant.
    gate_bytes = 2 * B * C * 4
    blk_budget = max(usable - gate_bytes, 0) // 4
    tblk = max(128, (blk_budget // (C * itemsize)) // 128 * 128)
    tblk = min(tblk, ((T + 127) // 128) * 128)
    return _se_two_pass(x, w1t, b1_r, w2t, b2_r,
                        tblk=tblk, vmem_limit=vmem_limit)


def se_module_ref(x, w1, b1, gamma, beta, running_mean, running_var, w2, b2):
    """Pure-JAX reference (matches PyTorch SEModule in eval mode)."""
    xm = jnp.mean(x.astype(jnp.float32), axis=-1)              # (B, C)
    h = xm @ w1.T + b1                                         # (B, BT)
    h = jnp.maximum(h, 0.0)
    h = (h - running_mean) / jnp.sqrt(running_var + EPS) * gamma + beta
    s = h @ w2.T + b2                                          # (B, C)
    gate = jax.nn.sigmoid(s)
    return (x * gate[:, :, None].astype(x.dtype)).astype(x.dtype)


if __name__ == "__main__":
    B, C, T = 4, 16, 128
    BOTTLENECK = 32

    key = jax.random.PRNGKey(0)
    keys = jax.random.split(key, 8)

    x = jax.random.normal(keys[0], (B, C, T), dtype=jnp.float32)

    # Conv1d(C, BT, k=1) weight is (BT, C, 1) in torch -> (BT, C) here.
    w1 = 0.1 * jax.random.normal(keys[1], (BOTTLENECK, C), dtype=jnp.float32)
    b1 = 0.1 * jax.random.normal(keys[2], (BOTTLENECK,), dtype=jnp.float32)

    gamma = 1.0 + 0.1 * jax.random.normal(keys[3], (BOTTLENECK,), dtype=jnp.float32)
    beta = 0.1 * jax.random.normal(keys[4], (BOTTLENECK,), dtype=jnp.float32)
    running_mean = 0.1 * jax.random.normal(keys[5], (BOTTLENECK,), dtype=jnp.float32)
    running_var = 0.5 + jax.random.uniform(keys[6], (BOTTLENECK,), dtype=jnp.float32)

    # Conv1d(BT, C, k=1) weight is (C, BT, 1) in torch -> (C, BT) here.
    w2 = 0.1 * jax.random.normal(keys[7], (C, BOTTLENECK), dtype=jnp.float32)
    b2 = jnp.zeros((C,), dtype=jnp.float32)

    args = (w1, b1, gamma, beta, running_mean, running_var, w2, b2)

    # Main (single-pass) path.
    out = jax.block_until_ready(se_module(x, *args))
    ref = se_module_ref(x, *args)
    assert out.shape == (B, C, T)
    assert jnp.allclose(out, ref, atol=1e-4, rtol=1e-4), "single-pass mismatch"

    # Exercise the two-pass (VMEM-overflow) fallback at small shapes too,
    # including odd B and a T that is not a multiple of 128 (masked tail).
    B2, T2 = 3, 200
    x2 = jax.random.normal(jax.random.PRNGKey(1), (B2, C, T2), dtype=jnp.float32)
    folded = _fold_params(*args)
    out2 = jax.block_until_ready(
        _se_two_pass(x2, *folded, tblk=128, vmem_limit=32 * _MIB))
    ref2 = se_module_ref(x2, *args)
    assert out2.shape == (B2, C, T2)
    assert jnp.allclose(out2, ref2, atol=1e-4, rtol=1e-4), "two-pass mismatch"

    print("KERNEL_OK")
</pallas_src>

<mosaic_0001>
module attributes {stable_mosaic.version = 11 : i64} {
  func.func @_se_kernel(%arg0: i32, %arg1: memref<2x16x128xf32, #tpu.memory_space<vmem>>, %arg2: memref<16x32xf32, #tpu.memory_space<vmem>>, %arg3: memref<1x32xf32, #tpu.memory_space<vmem>>, %arg4: memref<32x16xf32, #tpu.memory_space<vmem>>, %arg5: memref<1x16xf32, #tpu.memory_space<vmem>>, %arg6: memref<2x16x128xf32, #tpu.memory_space<vmem>>) attributes {dimension_semantics = [#tpu.dimension_semantics<parallel>], iteration_bounds = array<i64: 2>, scalar_prefetch = 0 : i64, scratch_operands = 0 : i64, tpu.core_type = #tpu.core_type<tc>, window_params = [{transform_indices = @transform_0, window_bounds = array<i64: 2, 16, 128>}, {pipeline_mode = #tpu.pipeline_mode<synchronous>, transform_indices = @transform_1, window_bounds = array<i64: 16, 32>}, {pipeline_mode = #tpu.pipeline_mode<synchronous>, transform_indices = @transform_2, window_bounds = array<i64: 1, 32>}, {pipeline_mode = #tpu.pipeline_mode<synchronous>, transform_indices = @transform_3, window_bounds = array<i64: 32, 16>}, {pipeline_mode = #tpu.pipeline_mode<synchronous>, transform_indices = @transform_4, window_bounds = array<i64: 1, 16>}, {transform_indices = @transform_5, window_bounds = array<i64: 2, 16, 128>}]} {
    %c0 = arith.constant 0 : index
    %c0_0 = arith.constant 0 : index
    %c0_1 = arith.constant 0 : index
    %0 = vector.load %arg1[%c0, %c0_0, %c0_1] : memref<2x16x128xf32, #tpu.memory_space<vmem>>, vector<2x16x128xf32>
    %cst = arith.constant dense<0.000000e+00> : vector<2x16xf32>
    %1 = vector.multi_reduction <add>, %0, %cst [2] : vector<2x16x128xf32> to vector<2x16xf32>
    %cst_2 = arith.constant 1.280000e+02 : f32
    %2 = vector.broadcast %cst_2 : f32 to vector<2x16xf32>
    %3 = arith.divf %1, %2 : vector<2x16xf32>
    %c0_3 = arith.constant 0 : index
    %c0_4 = arith.constant 0 : index
    %4 = vector.load %arg2[%c0_3, %c0_4] : memref<16x32xf32, #tpu.memory_space<vmem>>, vector<16x32xf32>
    %cst_5 = arith.constant dense<0.000000e+00> : vector<2x32xf32>
    %5 = tpu.matmul %3, %4, %cst_5 {dimension_numbers = #tpu.dot_dimension_numbers<[1], [0], [0], [1], [0, 0, 1, 1], [], []>} : vector<2x16xf32>, vector<16x32xf32>, vector<2x32xf32> -> vector<2x32xf32>
    %c0_6 = arith.constant 0 : index
    %c0_7 = arith.constant 0 : index
    %6 = vector.load %arg3[%c0_6, %c0_7] : memref<1x32xf32, #tpu.memory_space<vmem>>, vector<1x32xf32>
    %7 = vector.broadcast %6 : vector<1x32xf32> to vector<2x32xf32>
    %8 = arith.addf %5, %7 : vector<2x32xf32>
    %cst_8 = arith.constant 0.000000e+00 : f32
    %9 = vector.broadcast %cst_8 : f32 to vector<2x32xf32>
    %10 = arith.maximumf %8, %9 : vector<2x32xf32>
    %c0_9 = arith.constant 0 : index
    %c0_10 = arith.constant 0 : index
    %11 = vector.load %arg4[%c0_9, %c0_10] : memref<32x16xf32, #tpu.memory_space<vmem>>, vector<32x16xf32>
    %cst_11 = arith.constant dense<0.000000e+00> : vector<2x16xf32>
    %12 = tpu.matmul %10, %11, %cst_11 {dimension_numbers = #tpu.dot_dimension_numbers<[1], [0], [0], [1], [0, 0, 1, 1], [], []>} : vector<2x32xf32>, vector<32x16xf32>, vector<2x16xf32> -> vector<2x16xf32>
    %c0_12 = arith.constant 0 : index
    %c0_13 = arith.constant 0 : index
    %13 = vector.load %arg5[%c0_12, %c0_13] : memref<1x16xf32, #tpu.memory_space<vmem>>, vector<1x16xf32>
    %14 = vector.broadcast %13 : vector<1x16xf32> to vector<2x16xf32>
    %15 = arith.addf %12, %14 : vector<2x16xf32>
    %16 = arith.negf %15 : vector<2x16xf32>
    %17 = math.exp %16 : vector<2x16xf32>
    %cst_14 = arith.constant 1.000000e+00 : f32
    %18 = vector.broadcast %cst_14 : f32 to vector<2x16xf32>
    %19 = arith.addf %18, %17 : vector<2x16xf32>
    %20 = arith.divf %18, %19 : vector<2x16xf32>
    %21 = vector.shape_cast %20 : vector<2x16xf32> to vector<2x16x1xf32>
    %22 = vector.broadcast %21 : vector<2x16x1xf32> to vector<2x16x128xf32>
    %23 = arith.mulf %0, %22 : vector<2x16x128xf32>
    %c0_15 = arith.constant 0 : index
    %c0_16 = arith.constant 0 : index
    %c0_17 = arith.constant 0 : index
    %24 = vector.load %arg6[%c0_15, %c0_16, %c0_17] : memref<2x16x128xf32, #tpu.memory_space<vmem>>, vector<2x16x128xf32>
    tpu.vector_store %arg6[%c0_15, %c0_16, %c0_17], %23 {strides = array<i32>} : memref<2x16x128xf32, #tpu.memory_space<vmem>>, vector<2x16x128xf32>,
    return
  }
  func.func @transform_0(%arg0: i32) -> (i32, i32, i32) {
    %c0_i32 = arith.constant 0 : i32
    %c0_i32_0 = arith.constant 0 : i32
    %c0_i32_1 = arith.constant 0 : i32
    return %arg0, %c0_i32, %c0_i32_0 : i32, i32, i32
  }
  func.func @transform_1(%arg0: i32) -> (i32, i32) {
    %c0_i32 = arith.constant 0 : i32
    %c0_i32_0 = arith.constant 0 : i32
    %c0_i32_1 = arith.constant 0 : i32
    return %c0_i32, %c0_i32_0 : i32, i32
  }
  func.func @transform_2(%arg0: i32) -> (i32, i32) {
    %c0_i32 = arith.constant 0 : i32
    %c0_i32_0 = arith.constant 0 : i32
    %c0_i32_1 = arith.constant 0 : i32
    return %c0_i32, %c0_i32_0 : i32, i32
  }
  func.func @transform_3(%arg0: i32) -> (i32, i32) {
    %c0_i32 = arith.constant 0 : i32
    %c0_i32_0 = arith.constant 0 : i32
    %c0_i32_1 = arith.constant 0 : i32
    return %c0_i32, %c0_i32_0 : i32, i32
  }
  func.func @transform_4(%arg0: i32) -> (i32, i32) {
    %c0_i32 = arith.constant 0 : i32
    %c0_i32_0 = arith.constant 0 : i32
    %c0_i32_1 = arith.constant 0 : i32
    return %c0_i32, %c0_i32_0 : i32, i32
  }
  func.func @transform_5(%arg0: i32) -> (i32, i32, i32) {
    %c0_i32 = arith.constant 0 : i32
    %c0_i32_0 = arith.constant 0 : i32
    %c0_i32_1 = arith.constant 0 : i32
    return %arg0, %c0_i32, %c0_i32_0 : i32, i32, i32
  }
}

</mosaic_0001>

<llo_original>
// kernel: se_module.1
$region0: #{se_module.1}
  #allocation0 [shape = 'u32[]', space=smem, size = 0x4, offset = 0x4, fixed_abs, tag = 'smem constant byte address 0x4 - core index']
  #allocation1 [shape = 'u32[72,128]{1,0:T(1,128)}', space=vmem, size = 0x9000, scoped, tag = 'internal scratch']
  %s0 = inlined_call_operand.hbm [shape: f32[4,16,128], index: 0, kind: input, shape index: {}, may-alias: {0,5}]
  %s1 = inlined_call_operand.vmem [shape: f32[16,32], index: 1, kind: input, shape index: {}]
  %s2 = inlined_call_operand.vmem [shape: f32[1,32], index: 2, kind: input, shape index: {}]
  %s3 = inlined_call_operand.vmem [shape: f32[32,16], index: 3, kind: input, shape index: {}]
  %s4 = inlined_call_operand.vmem [shape: f32[1,16], index: 4, kind: input, shape index: {}]
  %s5 = inlined_call_operand.hbm [shape: f32[4,16,128], index: 5, kind: output, shape index: {}, may-alias: {0,5}]
  %s6 = sld [smem:[#allocation0]]
  $region57: #{se_module.1} parent=0
    _
  %s8 = ssub.s32 1, %s6
  %s9 = scalar_select 0, %s8, %s6
  $region1: #{se_module.1} parent=0
    #allocation2 [shape = 'u8[32768]{0}', space=vmem, size = 0x8000, scoped, tag = 'input window, operand 0']
    #allocation3 [shape = 's32[2]{0}', space=sflag, size = 0x8, scoped, tag = 'scoped memory for se_module.1']
    #allocation4 [shape = 's32[2]{0}', space=sflag, size = 0x8, scoped, tag = 'scoped memory for se_module.1']
    #allocation5 [shape = 'u8[32768]{0}', space=vmem, size = 0x8000, scoped, tag = 'output window, operand 0']
    %10 = vsyncpa [#allocation3], 0
    %s11 = scalar_lea.sflag [#allocation3], 1
    %12 = vsyncpa %s11, 0
    %13 = vsyncpa [#allocation4], 0
    %s14 = scalar_lea.sflag [#allocation4], 1
    %15 = vsyncpa %s14, 0
    loop: start=0, step=1, limit=4
    $region2: #{se_module.1} parent=1 // loop_pre_header
      _
    $region3: #{se_module.1} parent=1 // loop_header
      %s17 = sphi 0, %s21
      %p18 = scmp.ge.s32.totalorder %s17, 4
      %s27 = sphi 0, %s29
      %s30 = sphi 0, %s27
      %s31 = sphi 0, %s30
      %s47 = sphi 0, %s31
      %s51 = sphi 0, %s51
      %s53 = sphi 0, %s51
      %s54 = sphi 0, %s53
      %s68 = sphi 0, %s54
      %s72 = sphi 0, %s72
      %s74 = sphi 0, %s72
      %s75 = sphi 0, %s74
      %s89 = sphi 0, %s75
      %s93 = sphi 0, %s93
      %s95 = sphi 0, %s93
      %s96 = sphi 0, %s95
      %s110 = sphi 0, %s96
      %s114 = sphi 0, %s114
      %s116 = sphi 0, %s114
      %s117 = sphi 0, %s116
      %s131 = sphi 0, %s117
      %s137 = sphi 0, %s139
      %s140 = sphi 0, %s137
      %s141 = sphi 0, %s140
      %s157 = sphi 0, %s141
    $region4: #{se_module.1} parent=1 // loop_header_branch
      %20 = sbr.rel (%p18) target = $region8
    $region5: #{se_module.1} parent=1 // loop_body
      %s22 = ssub.s32 %s17, 1
      %s23 = ssub.s32 %s17, 2
      %s24 = sadd.s32 %s17, 1
      %s25 = ssub.s32 %s17, %s24
      %p26 = scmp.eq.s32.totalorder %s25, 0
      %s28 = sadd.s32 %s27, 1
      %s29 = scalar_select %p26, %s27, %s28
      %p32 = pneg %p26
      %p33 = scmp.eq.s32.totalorder %s17, 1
      %p34 = por %p32, %p33
      %p35 = scmp.ne.s32.totalorder %s27, %s30
      %p36 = scmp.eq.s32.totalorder %s17, 0
      %p37 = por %p35, %p36
      %p38 = scmp.ne.s32.totalorder %s27, %s30
      %p39 = scmp.eq.s32.totalorder %s22, 1
      %p40 = por %p38, %p39
      %p41 = scmp.ne.s32.totalorder %s30, %s31
      %p42 = scmp.eq.s32.totalorder %s22, 0
      %p43 = por %p41, %p42
      %p44 = scmp.ne.s32.totalorder %s30, %s31
      %p45 = scmp.eq.s32.totalorder %s23, 1
      %p46 = por %p44, %p45
      %p48 = scmp.ne.s32.totalorder %s31, %s47
      %p49 = scmp.eq.s32.totalorder %s23, 0
      %p50 = por %p48, %p49
      %s52 = sadd.s32 %s51, 1
      %p55 = scmp.eq.s32.totalorder %s17, 1
      %p56 = scmp.ne.s32.totalorder %s51, %s53
      %p57 = scmp.eq.s32.totalorder %s17, 0
      %p58 = por %p56, %p57
      %p59 = scmp.ne.s32.totalorder %s51, %s53
      %p60 = scmp.eq.s32.totalorder %s22, 1
      %p61 = por %p59, %p60
      %p62 = scmp.ne.s32.totalorder %s53, %s54
      %p63 = scmp.eq.s32.totalorder %s22, 0
      %p64 = por %p62, %p63
      %p65 = scmp.ne.s32.totalorder %s53, %s54
      %p66 = scmp.eq.s32.totalorder %s23, 1
      %p67 = por %p65, %p66
      %p69 = scmp.ne.s32.totalorder %s54, %s68
      %p70 = scmp.eq.s32.totalorder %s23, 0
      %p71 = por %p69, %p70
      %s73 = sadd.s32 %s72, 1
      %p76 = scmp.eq.s32.totalorder %s17, 1
      %p77 = scmp.ne.s32.totalorder %s72, %s74
      %p78 = scmp.eq.s32.totalorder %s17, 0
      %p79 = por %p77, %p78
      %p80 = scmp.ne.s32.totalorder %s72, %s74
      %p81 = scmp.eq.s32.totalorder %s22, 1
      %p82 = por %p80, %p81
      %p83 = scmp.ne.s32.totalorder %s74, %s75
      %p84 = scmp.eq.s32.totalorder %s22, 0
      %p85 = por %p83, %p84
      %p86 = scmp.ne.s32.totalorder %s74, %s75
      %p87 = scmp.eq.s32.totalorder %s23, 1
      %p88 = por %p86, %p87
      %p90 = scmp.ne.s32.totalorder %s75, %s89
      %p91 = scmp.eq.s32.totalorder %s23, 0
      %p92 = por %p90, %p91
      %s94 = sadd.s32 %s93, 1
      %p97 = scmp.eq.s32.totalorder %s17, 1
      %p98 = scmp.ne.s32.totalorder %s93, %s95
      %p99 = scmp.eq.s32.totalorder %s17, 0
      %p100 = por %p98, %p99
      %p101 = scmp.ne.s32.totalorder %s93, %s95
      %p102 = scmp.eq.s32.totalorder %s22, 1
      %p103 = por %p101, %p102
      %p104 = scmp.ne.s32.totalorder %s95, %s96
      %p105 = scmp.eq.s32.totalorder %s22, 0
      %p106 = por %p104, %p105
      %p107 = scmp.ne.s32.totalorder %s95, %s96
      %p108 = scmp.eq.s32.totalorder %s23, 1
      %p109 = por %p107, %p108
      %p111 = scmp.ne.s32.totalorder %s96, %s110
      %p112 = scmp.eq.s32.totalorder %s23, 0
      %p113 = por %p111, %p112
      %s115 = sadd.s32 %s114, 1
      %p118 = scmp.eq.s32.totalorder %s17, 1
      %p119 = scmp.ne.s32.totalorder %s114, %s116
      %p120 = scmp.eq.s32.totalorder %s17, 0
      %p121 = por %p119, %p120
      %p122 = scmp.ne.s32.totalorder %s114, %s116
      %p123 = scmp.eq.s32.totalorder %s22, 1
      %p124 = por %p122, %p123
      %p125 = scmp.ne.s32.totalorder %s116, %s117
      %p126 = scmp.eq.s32.totalorder %s22, 0
      %p127 = por %p125, %p126
      %p128 = scmp.ne.s32.totalorder %s116, %s117
      %p129 = scmp.eq.s32.totalorder %s23, 1
      %p130 = por %p128, %p129
      %p132 = scmp.ne.s32.totalorder %s117, %s131
      %p133 = scmp.eq.s32.totalorder %s23, 0
      %p134 = por %p132, %p133
      %s135 = ssub.s32 %s17, %s24
      %p136 = scmp.eq.s32.totalorder %s135, 0
      %s138 = sadd.s32 %s137, 1
      %s139 = scalar_select %p136, %s137, %s138
      %p142 = pneg %p136
      %p143 = scmp.eq.s32.totalorder %s17, 1
      %p144 = por %p142, %p143
      %p145 = scmp.ne.s32.totalorder %s137, %s140
      %p146 = scmp.eq.s32.totalorder %s17, 0
      %p147 = por %p145, %p146
      %p148 = scmp.ne.s32.totalorder %s137, %s140
      %p149 = scmp.eq.s32.totalorder %s22, 1
      %p150 = por %p148, %p149
      %p151 = scmp.ne.s32.totalorder %s140, %s141
      %p152 = scmp.eq.s32.totalorder %s22, 0
      %p153 = por %p151, %p152
      %p154 = scmp.ne.s32.totalorder %s140, %s141
      %p155 = scmp.eq.s32.totalorder %s23, 1
      %p156 = por %p154, %p155
      %p158 = scmp.ne.s32.totalorder %s141, %s157
      %p159 = scmp.eq.s32.totalorder %s23, 0
      %p160 = por %p158, %p159
      %p161 = scmp.le.s32.totalorder 1, %s17
      %p162 = scmp.lt.s32.totalorder %s17, 3
      %p163 = pnand %p161, %p162
      %p164 = pneg %p163
      // Predicated region
      $region9: #{se_module.1} parent=5 // pred_check
        _
      $region10: #{se_module.1} parent=5 // pred_check_branch
        %166 = sbr.rel (%p163) target = $region12
      $region11: #{se_module.1} parent=5 // pred_region
        %s167 = ssub.s32 %s17, 1
        // Predicated region
        $region13: #{se_module.1} parent=11 // pred_check
          %p168 = pneg %p64
        $region14: #{se_module.1} parent=11 // pred_check_branch
          %170 = sbr.rel (%p168) target = $region16
        $region15: #{se_module.1} parent=11 // pred_region
          _
        $region16: #{se_module.1} parent=11 // pred_fallthru
          _
        // Predicated region
        $region17: #{se_module.1} parent=11 // pred_check
          %p171 = pneg %p85
        $region18: #{se_module.1} parent=11 // pred_check_branch
          %173 = sbr.rel (%p171) target = $region20
        $region19: #{se_module.1} parent=11 // pred_region
          _
        $region20: #{se_module.1} parent=11 // pred_fallthru
          _
        // Predicated region
        $region21: #{se_module.1} parent=11 // pred_check
          %p174 = pneg %p106
        $region22: #{se_module.1} parent=11 // pred_check_branch
          %176 = sbr.rel (%p174) target = $region24
        $region23: #{se_module.1} parent=11 // pred_region
          _
        $region24: #{se_module.1} parent=11 // pred_fallthru
          _
        // Predicated region
        $region25: #{se_module.1} parent=11 // pred_check
          %p177 = pneg %p127
        $region26: #{se_module.1} parent=11 // pred_check_branch
          %179 = sbr.rel (%p177) target = $region28
        $region27: #{se_module.1} parent=11 // pred_region
          _
        $region28: #{se_module.1} parent=11 // pred_fallthru
          _
      $region12: #{se_module.1} parent=5 // pred_fallthru
        _
      %p180 = scmp.lt.s32.totalorder %s17, 2
      // Predicated region
      $region29: #{se_module.1} parent=5 // pred_check
        %p181 = pneg %p180
      $region30: #{se_module.1} parent=5 // pred_check_branch
        %183 = sbr.rel (%p181) target = $region32
      $region31: #{se_module.1} parent=5 // pred_region
        // Predicated region
        $region33: #{se_module.1} parent=31 // pred_check
          %p184 = pneg %p37
        $region34: #{se_module.1} parent=31 // pred_check_branch
          %186 = sbr.rel (%p184) target = $region36
        $region35: #{se_module.1} parent=31 // pred_region
          %s187 = sand.u32 %s27, 1
          %s188 = scalar_lea.sflag [#allocation3], %s187
          %s189 = sand.u32 %s27, 1
          %s190 = smul.addr %s189, 32
          %s191 = scalar_lea.vmem [#allocation2], %s190
          %s192 = smul.u32 2, %s17
          %194 = vsyncadd %s188, 0
          %s195 = smul.addr %s192, 2
          %s196 = smul.addr %s195, 8
          %s197 = scalar_lea.hbm %s0, %s196
          %s198 = sshll.u32 %s197, 4
          %s199 = int_to_ptr.hbm [resolvable:$true] %s198
          %s200 = sshll.u32 %s191, 4
          %s201 = int_to_ptr.vmem [resolvable:$true] %s200
          %206 = dma.hbm_to_vmem [thread:$0]  %s199, 512, %s201, %s188, 128, 128, 8
        $region36: #{se_module.1} parent=31 // pred_fallthru
          _
      $region32: #{se_module.1} parent=5 // pred_fallthru
        _
      %p207 = scmp.le.s32.totalorder 1, %s17
      %p208 = scmp.lt.s32.totalorder %s17, 3
      %p209 = pnand %p207, %p208
      %p210 = pneg %p209
      // Predicated region
      $region37: #{se_module.1} parent=5 // pred_check
        _
      $region38: #{se_module.1} parent=5 // pred_check_branch
        %212 = sbr.rel (%p209) target = $region40
      $region39: #{se_module.1} parent=5 // pred_region
        %s213 = ssub.s32 %s17, 1
        %s214 = sand.u32 %s30, 1
        %s215 = scalar_lea.sflag [#allocation3], %s214
        %s216 = sand.u32 %s30, 1
        %s217 = smul.addr %s216, 32
        %s218 = scalar_lea.vmem [#allocation2], %s217
        // Predicated region
        $region41: #{se_module.1} parent=39 // pred_check
          %p219 = pneg %p43
        $region42: #{se_module.1} parent=39 // pred_check_branch
          %221 = sbr.rel (%p219) target = $region44
        $region43: #{se_module.1} parent=39 // pred_region
          %223 = dma.done %s215, 512
        $region44: #{se_module.1} parent=39 // pred_fallthru
          _
        %s224 = sand.u32 %s30, 1
        %s225 = scalar_lea.sflag [#allocation3], %s224
        %s226 = sand.u32 %s30, 1
        %s227 = smul.addr %s226, 32
        %s228 = scalar_lea.vmem [#allocation2], %s227
        %p229 = pneg %p43
        %p230 = pneg %p40
        %p231 = pneg %p64
        %p232 = pneg %p61
        %p233 = pneg %p85
        %p234 = pneg %p82
        %p235 = pneg %p106
        %p236 = pneg %p103
        %p237 = pneg %p127
        %p238 = pneg %p124
        %p239 = pneg %p153
        %p240 = pneg %p150
        %s241 = sand.u32 %s140, 1
        %s242 = scalar_lea.sflag [#allocation4], %s241
        %s243 = sand.u32 %s140, 1
        %s244 = smul.addr %s243, 32
        %s245 = scalar_lea.vmem [#allocation5], %s244
        %s246 = smul.u32 2, %s22
        %s247 = smul.u32 2, %s22
        %v248 = vld [vmem:[%s218] sm:$0xff]
        %v249 = vld [vmem:[%s218 + $0x8] sm:$0xff]
        %v250 = vld [vmem:[%s218 + $0x10] sm:$0xff]
        %v251 = vld [vmem:[%s218 + $0x18] sm:$0xff]
        %252 = vadd.xlane.f32.xlu0 %v248
        %v253 = vpop.xlane.xlu0 %252
        %254 = vadd.xlane.f32.xlu0 %v249
        %v255 = vpop.xlane.xlu0 %254
        %256 = vadd.xlane.f32.xlu0 %v250
        %v257 = vpop.xlane.xlu0 %256
        %258 = vadd.xlane.f32.xlu0 %v251
        %v259 = vpop.xlane.xlu0 %258
        %v260 = vrcp.pop 128.0
        %v261 = vmul.f32 128.0, %v260
        %v262 = vsub.f32 1.0, %v261
        %v263 = vmul.f32 %v260, %v262
        %v264 = vadd.f32 %v260, %v263
        %vm265 = vweird.f32 %v260
        %v266 = vsel %vm265, %v260, %v264
        %v267 = vmul.f32 %v253, %v266
        %v268 = vmul.f32 %v255, %v266
        %v269 = vmul.f32 %v257, %v266
        %v270 = vmul.f32 %v259, %v266
        %v271 = vld [vmem:[%s1] sm:$0xff]
        %v272 = vld [vmem:[%s1 + $0x8] sm:$0xff]
        %v273 = vld [vmem:[%s2] sm:$0x1]
        %v275 = vperm.slane %v273, 0
        %v281 = vlaneseq
        %v282 = vand.u32 %v281, 127
        %v283 = vperm.slane %v267, %v282
        %v284 = vadd.s32 %v282, 4294967288
        %v285 = vperm.slane %v268, %v284
        %vm286 = vcmask 130112
        %v287 = vsel %vm286, %v285, %v283
        %v288 = vperm.slane %v269, %v282
        %v289 = vperm.slane %v270, %v284
        %v290 = vsel %vm286, %v289, %v288
        %vm291 = vcmask 1041409
        %v292 = vsel %vm291, %v290, %v287
        %vm293 = vcmask 130048
        %v294 = vsel %vm293, %v292, 0
        %296 = vmatpush.msra.mxu0 0.0
        %297 = vmatpush.msra.mxu0 0.0
        %298 = vmatpush.msra.mxu0 0.0
        %299 = vmatpush.msra.mxu0 0.0
        %300 = vmatpush.msra.mxu0 0.0
        %301 = vmatpush.msra.mxu0 0.0
        %302 = vmatpush.msra.mxu0 0.0
        %303 = vmatpush.msra.mxu0 0.0
        %304 = vmatpush.msra.mxu0 0.0
        %305 = vmatpush.msra.mxu0 0.0
        %306 = vmatpush.msra.mxu0 0.0
        %307 = vmatpush.msra.mxu0 0.0
        %308 = vmatpush.msra.mxu0 0.0
        %309 = vmatpush.msra.mxu0 0.0
        %310 = vmatpush.msra.mxu0 %v272
        %311 = vmatpush.msra.mxu0 %v271
        %312 = vmatmul.f32.gmra.mxu0 %v294
        %v313 = vpop.f32.mrf.mxu0
        %v314 = vadd.f32 %v275, %v313
        %315 = vdwg.mxu0
        %v316 = vmax.f32 %v314, 0.0
        %v317 = vld [vmem:[%s3] sm:$0xff]
        %v318 = vld [vmem:[%s3 + $0x8] sm:$0xff]
        %v319 = vld [vmem:[%s3 + $0x10] sm:$0xff]
        %v320 = vld [vmem:[%s3 + $0x18] sm:$0xff]
        %v321 = vld [vmem:[%s4] sm:$0x1]
        %v323 = vperm.slane %v321, 0
        %vm325 = vcmask 261120
        %v327 = vsel %vm325, %v316, 0
        %329 = vmatpush.msra.mxu0 0.0
        %330 = vmatpush.msra.mxu0 0.0
        %331 = vmatpush.msra.mxu0 0.0
        %332 = vmatpush.msra.mxu0 0.0
        %333 = vmatpush.msra.mxu0 0.0
        %334 = vmatpush.msra.mxu0 0.0
        %335 = vmatpush.msra.mxu0 0.0
        %336 = vmatpush.msra.mxu0 0.0
        %337 = vmatpush.msra.mxu0 0.0
        %338 = vmatpush.msra.mxu0 0.0
        %339 = vmatpush.msra.mxu0 0.0
        %340 = vmatpush.msra.mxu0 0.0
        %341 = vmatpush.msra.mxu0 %v320
        %342 = vmatpush.msra.mxu0 %v319
        %343 = vmatpush.msra.mxu0 %v318
        %344 = vmatpush.msra.mxu0 %v317
        %345 = vmatmul.f32.gmra.mxu0 %v327
        %v346 = vpop.f32.mrf.mxu0
        %v347 = vadd.f32 %v323, %v346
        %348 = vdwg.mxu0
        %v349 = vxor.u32 %v347, 2147483648
        %v350 = vmul.f32 %v349, 1.442695
        %v351 = vpow.pop %v350
        %v352 = vadd.f32 %v351, 1.0
        %v353 = vrcp.pop %v352
        %v354 = vmul.f32 %v352, %v353
        %v355 = vsub.f32 1.0, %v354
        %v356 = vmul.f32 %v353, %v355
        %v357 = vadd.f32 %v353, %v356
        %vm358 = vweird.f32 %v352
        %vm359 = vweird.f32 %v353
        %vm360 = vmor %vm358, %vm359
        %v361 = vsel %vm360, %v353, %v357
        %v362 = vand.u32 2147483647, %v352
        %vm363 = vcmp.eq.f32.partialorder %v362, 8.507059e+37
        %v364 = vand.u32 %v352, 2147483648
        %v365 = vor.u32 1.1754944e-38, %v364
        %v366 = vsel %vm363, %v365, %v361
        %v367 = vmul.f32 1.0, %v366
        %v368 = vperm.slane %v367, 0
        %v369 = vlaneseq
        %v370 = vshrl.u32 %v369, 7
        %372 = vset.pattern.permute.xlu0 %v370
        %373 = vperm.xlu0 %372, %v368
        %v374 = vpop.permute.xlu0 %373
        %v375 = vlaneseq
        %v376 = vshrl.u32 %v375, 7
        %v377 = vadd.s32 %v376, 8
        %378 = vset.pattern.permute.xlu0 %v377
        %379 = vperm.xlu0 %378, %v368
        %v380 = vpop.permute.xlu0 %379
        %v381 = vperm.slane %v367, 1
        %v382 = vlaneseq
        %v383 = vshrl.u32 %v382, 7
        %385 = vset.pattern.permute.xlu0 %v383
        %386 = vperm.xlu0 %385, %v381
        %v387 = vpop.permute.xlu0 %386
        %v388 = vlaneseq
        %v389 = vshrl.u32 %v388, 7
        %v390 = vadd.s32 %v389, 8
        %391 = vset.pattern.permute.xlu0 %v390
        %392 = vperm.xlu0 %391, %v381
        %v393 = vpop.permute.xlu0 %392
        %v394 = vmul.f32 %v248, %v374
        %v395 = vmul.f32 %v249, %v380
        %v396 = vmul.f32 %v250, %v387
        %v397 = vmul.f32 %v251, %v393
        %398 = vst [vmem:[%s245] sm:$0xff] %v394
        %399 = vst [vmem:[%s245 + $0x8] sm:$0xff] %v395
        %400 = vst [vmem:[%s245 + $0x10] sm:$0xff] %v396
        %401 = vst [vmem:[%s245 + $0x18] sm:$0xff] %v397
        %s402 = sand.u32 %s140, 1
        %s403 = scalar_lea.sflag [#allocation4], %s402
        %s404 = sand.u32 %s140, 1
        %s405 = smul.addr %s404, 32
        %s406 = scalar_lea.vmem [#allocation5], %s405
        // Predicated region
        $region45: #{se_module.1} parent=39 // pred_check
          %p407 = pneg %p150
        $region46: #{se_module.1} parent=39 // pred_check_branch
          %409 = sbr.rel (%p407) target = $region48
        $region47: #{se_module.1} parent=39 // pred_region
          %s410 = smul.u32 2, %s22
          %412 = vsyncadd %s403, 0
          %s413 = smul.addr %s410, 2
          %s414 = smul.addr %s413, 8
          %s415 = scalar_lea.hbm %s5, %s414
          %s416 = sshll.u32 %s406, 4
          %s417 = int_to_ptr.vmem [resolvable:$true] %s416
          %s418 = sshll.u32 %s415, 4
          %s419 = int_to_ptr.hbm [resolvable:$true] %s418
          %424 = dma.vmem_to_hbm [thread:$0]  %s417, 512, %s419, %s403, 128, 128, 8
        $region48: #{se_module.1} parent=39 // pred_fallthru
          _
      $region40: #{se_module.1} parent=5 // pred_fallthru
        _
      %p425 = scmp.le.s32.totalorder 2, %s17
      // Predicated region
      $region49: #{se_module.1} parent=5 // pred_check
        %p426 = pneg %p425
      $region50: #{se_module.1} parent=5 // pred_check_branch
        %428 = sbr.rel (%p426) target = $region52
      $region51: #{se_module.1} parent=5 // pred_region
        %s429 = ssub.s32 %s17, 2
        // Predicated region
        $region53: #{se_module.1} parent=51 // pred_check
          %p430 = pneg %p156
        $region54: #{se_module.1} parent=51 // pred_check_branch
          %432 = sbr.rel (%p430) target = $region56
        $region55: #{se_module.1} parent=51 // pred_region
          %s433 = sand.u32 %s141, 1
          %s434 = scalar_lea.sflag [#allocation4], %s433
          %s435 = sand.u32 %s141, 1
          %s436 = smul.addr %s435, 32
          %s437 = scalar_lea.vmem [#allocation5], %s436
          %439 = dma.done %s434, 512
        $region56: #{se_module.1} parent=51 // pred_fallthru
          _
      $region52: #{se_module.1} parent=5 // pred_fallthru
        _
    $region6: #{se_module.1} parent=1 // loop_footer
      %s21 = sadd.s32 1, %s17
    $region7: #{se_module.1} parent=1 // loop_footer_branch
      %16 = sbr.rel target = $region3
    $region8: #{se_module.1} parent=1 // loop_exit
      _
    %440 = vsyncpa [#allocation3], 1
    %s441 = scalar_lea.sflag [#allocation3], 1
    %442 = vsyncpa %s441, 1
    %443 = vsyncpa [#allocation4], 1
    %s444 = scalar_lea.sflag [#allocation4], 1
    %445 = vsyncpa %s444, 1

</llo_original>
